<compile_context>
chip_gen: v7x
topology: tpu7x:2x2x1
jax: 0.10.0
libtpu: 0.0.40
codegen_flags: <defaults>
</compile_context>

<pallas_src>
import functools

import jax
import jax.numpy as jnp
from jax import lax
from jax.experimental import pallas as pl
from jax.experimental.pallas import tpu as pltpu

_MiB = 1024 * 1024


# --------------------------------------------------------------------------- #
# Trace-time hardware queries (safe fallbacks everywhere)
# --------------------------------------------------------------------------- #
def _vmem_capacity_bytes():
    try:
        return int(pltpu.get_tpu_info().vmem_capacity_bytes)
    except Exception:
        return 64 * _MiB          # v7x-safe fallback


def _num_tensorcores():
    """2 on dual-TensorCore chips (v4 / v5p / v7x); 1 on v5e / v6e."""
    try:
        kind = jax.devices()[0].device_kind.lower().replace(" ", "")
    except Exception:
        return 1
    for tag in ("v4", "v5p", "v7", "tpu7"):
        if tag in kind:
            return 2
    return 1


def _vmem_budget():
    """(per-step working-set budget, scoped-vmem limit) in bytes."""
    cap = _vmem_capacity_bytes()
    limit = max(32 * _MiB, min(cap - 16 * _MiB, 64 * _MiB))
    return limit // 2, limit


# --------------------------------------------------------------------------- #
# Lane-dense layout helpers
# --------------------------------------------------------------------------- #
_LANE_WIDTHS = (512, 384, 256, 128)


def _lane_layout(total_elems):
    """Pick a lane-dense row width (multiple of 128); pad only if unavoidable."""
    for c in _LANE_WIDTHS:
        if total_elems % c == 0:
            return c, total_elems
    c = _LANE_WIDTHS[0]
    return c, ((total_elems + c - 1) // c) * c


def _as_lane_dense(x, lane_width, padded_total):
    total = x.size
    flat = x.reshape(total)                      # free: contiguous, row-major
    if padded_total != total:
        # XLA pad materializes a copy; only hit when N_rays*N_samples is not a
        # multiple of 128 (rare for production ray batches).  Both operands are
        # zero-padded, so padded elements contribute exactly 0 to the sum.
        flat = jnp.pad(flat, (0, padded_total - total))
    return flat.reshape(padded_total // lane_width, lane_width)


# --------------------------------------------------------------------------- #
# Kernel
# --------------------------------------------------------------------------- #
def _make_sq_sum_kernel(n_pairs, rows, lane_width, tile_rows, n_blocks,
                        blocks_per_chunk, has_row_remainder, has_padded_steps):
    """sum((real - vis)^2) per pair, streamed over lane-dense row tiles."""

    def kernel(*refs):
        in_refs = refs[:2 * n_pairs]
        out_refs = refs[2 * n_pairs:3 * n_pairs]
        acc_refs = refs[3 * n_pairs:]
        chunk = pl.program_id(0)       # "parallel" axis (megacore on 2-TC chips)
        step = pl.program_id(1)        # "arbitrary" (reduction) axis, innermost
        blk = chunk * blocks_per_chunk + step

        @pl.when(step == 0)
        def _init():
            for acc in acc_refs:
                acc[...] = jnp.zeros_like(acc)

        def _accum(masked):
            if masked:
                row = blk * tile_rows + lax.broadcasted_iota(
                    jnp.int32, (tile_rows, lane_width), 0)
                valid = row < rows
            for p in range(n_pairs):
                # Subtract in the input dtype, square in f32.  (v6e/v7x keep
                # bf16 on the VPU; on v5e bf16 is widened to f32 -- bf16 only
                # saves HBM bytes there.)
                d = (in_refs[2 * p][...] - in_refs[2 * p + 1][...]).astype(
                    jnp.float32)
                sq = d * d
                if masked:
                    # Edge block is a partial DMA: rows beyond `rows` contain
                    # stale VMEM (possibly NaN/Inf).  MUST remain a select
                    # (jnp.where), never a multiply-by-mask, so garbage can
                    # never leak into the accumulator.
                    sq = jnp.where(valid, sq, 0.0)
                acc_refs[p][...] += sq

        in_range = blk < n_blocks      # padded grid steps accumulate nothing
        if has_row_remainder:
            is_edge = blk == n_blocks - 1

            @pl.when(jnp.logical_and(in_range, jnp.logical_not(is_edge)))
            def _full():
                _accum(masked=False)

            @pl.when(jnp.logical_and(in_range, is_edge))
            def _edge():
                _accum(masked=True)
        elif has_padded_steps:
            @pl.when(in_range)
            def _guarded():
                _accum(masked=False)
        else:
            _accum(masked=False)

        @pl.when(step == blocks_per_chunk - 1)
        def _finalize():
            # In-kernel sublane reduction (rides the XLU slot under the DMA
            # shadow).  Only a tiny (1, 1, lane_width) per-chunk partial goes
            # back to HBM -- no accumulator-slab writeback.
            for p in range(n_pairs):
                out_refs[p][...] = jnp.sum(acc_refs[p][...], axis=0,
                                           keepdims=True)[None]

    return kernel


def _pair_sq_sums(pairs, tile_rows_override=None, chunks_override=None):
    """sum((real - vis)**2) for each (real, vis) pair (all pairs share a shape)."""
    n_pairs = len(pairs)
    shape = pairs[0][0].shape
    for real, vis in pairs:
        if real.ndim != 2 or real.shape != shape or vis.shape != shape:
            raise ValueError("all (real, vis) pairs must share one 2-D shape")
    total = shape[0] * shape[1]

    lane_width, padded_total = _lane_layout(total)
    rows = padded_total // lane_width
    flat_in = [_as_lane_dense(a, lane_width, padded_total)
               for pr in pairs for a in pr]

    itemsize = max(jnp.dtype(a.dtype).itemsize for a in flat_in)
    min_itemsize = min(jnp.dtype(a.dtype).itemsize for a in flat_in)
    row_align = {4: 8, 2: 16, 1: 32}.get(min_itemsize, 32)

    budget, vmem_limit = _vmem_budget()
    # Per row of tile: 2*n_pairs inputs x 2 pipeline buffers + n_pairs f32 acc.
    bytes_per_row = lane_width * (4 * n_pairs * itemsize + 4 * n_pairs)
    tile_rows = max(row_align, budget // bytes_per_row)
    tile_rows -= tile_rows % row_align
    if tile_rows_override is not None:
        tile_rows = int(tile_rows_override)
    if tile_rows >= rows:
        tile_rows = rows                   # single full-height block

    n_blocks = pl.cdiv(rows, tile_rows)
    has_row_remainder = (rows % tile_rows) != 0

    num_chunks = (_num_tensorcores() if chunks_override is None
                  else int(chunks_override))
    num_chunks = max(1, min(num_chunks, n_blocks))
    blocks_per_chunk = pl.cdiv(n_blocks, num_chunks)
    has_padded_steps = num_chunks * blocks_per_chunk != n_blocks

    def in_index(c, i):
        # Padded grid steps clamp to the last real block so the DMA stays in
        # bounds; the kernel skips their accumulation via `blk < n_blocks`.
        return (jnp.minimum(c * blocks_per_chunk + i, n_blocks - 1), 0)

    in_spec = pl.BlockSpec((tile_rows, lane_width), in_index)
    out_spec = pl.BlockSpec((1, 1, lane_width), lambda c, i: (c, 0, 0))

    cost = pl.CostEstimate(
        flops=3 * n_pairs * padded_total,
        transcendentals=0,
        bytes_accessed=(2 * n_pairs * padded_total * itemsize
                        + n_pairs * num_chunks * lane_width * 4))

    kernel = _make_sq_sum_kernel(n_pairs, rows, lane_width, tile_rows, n_blocks,
                                 blocks_per_chunk, has_row_remainder,
                                 has_padded_steps)
    partials = pl.pallas_call(
        kernel,
        out_shape=tuple(
            jax.ShapeDtypeStruct((num_chunks, 1, lane_width), jnp.float32)
            for _ in range(n_pairs)),
        grid_spec=pltpu.PrefetchScalarGridSpec(
            num_scalar_prefetch=0,
            grid=(num_chunks, blocks_per_chunk),
            in_specs=[in_spec] * (2 * n_pairs),
            out_specs=tuple(out_spec for _ in range(n_pairs)),
            scratch_shapes=[pltpu.VMEM((tile_rows, lane_width), jnp.float32)
                            for _ in range(n_pairs)]),
        compiler_params=pltpu.CompilerParams(
            dimension_semantics=("parallel", "arbitrary"),
            vmem_limit_bytes=vmem_limit),
        cost_estimate=cost,
    )(*flat_in)
    if not isinstance(partials, (tuple, list)):
        partials = (partials,)

    # Tiny epilogue: num_chunks * lane_width f32 per pair -> scalar (XLA-fused).
    return [jnp.sum(p) for p in partials]


# --------------------------------------------------------------------------- #
# Loss wrapper (forward semantics of the BlockNeRF loss)
# --------------------------------------------------------------------------- #
def _squeeze_last(x):
    return jnp.squeeze(x, axis=-1) if (x.ndim == 3 and x.shape[-1] == 1) else x


@functools.partial(jax.jit,
                   static_argnames=("tile_rows_override", "chunks_override"))
def block_nerf_loss(inputs, targets, lambda_mu=0.01, visi_loss=0.01,
                    tile_rows_override=None, chunks_override=None):
    tc_real = inputs["transmittance_coarse_real"]
    tf_real = inputs["transmittance_fine_real"]
    # .detach() on the vis prediction: forward-identical (stop_gradient).
    tc_vis = lax.stop_gradient(_squeeze_last(inputs["transmittance_coarse_vis"]))
    tf_vis = lax.stop_gradient(_squeeze_last(inputs["transmittance_fine_vis"]))

    if tc_real.shape == tf_real.shape:
        sum_c, sum_f = _pair_sq_sums([(tc_real, tc_vis), (tf_real, tf_vis)],
                                     tile_rows_override, chunks_override)
    else:   # coarse / fine sample counts differ -> one Pallas call per pair
        (sum_c,) = _pair_sq_sums([(tc_real, tc_vis)],
                                 tile_rows_override, chunks_override)
        (sum_f,) = _pair_sq_sums([(tf_real, tf_vis)],
                                 tile_rows_override, chunks_override)

    mse_tc = sum_c / (tc_real.shape[0] * tc_real.shape[1])
    mse_tf = sum_f / (tf_real.shape[0] * tf_real.shape[1])

    # Lane-sparse [N,3]/[N,4] rgb terms: <1% of the bytes -> plain JAX / XLA.
    tgt_rgb = targets[..., :3].astype(jnp.float32)
    d_c = inputs["rgb_coarse"].astype(jnp.float32) - tgt_rgb
    d_f = inputs["rgb_fine"].astype(jnp.float32) - tgt_rgb
    return {
        "rgb_coarse": lambda_mu * jnp.mean(d_c * d_c),
        "rgb_fine": jnp.mean(d_f * d_f),
        "transmittance_coarse": lambda_mu * visi_loss * mse_tc,
        "transmittance_fine": visi_loss * mse_tf,
    }


# --------------------------------------------------------------------------- #
# Pure-JAX reference (mirrors the PyTorch forward)
# --------------------------------------------------------------------------- #
def _reference(inputs, targets, lambda_mu=0.01, visi_loss=0.01):
    tgt_rgb = targets[..., :3]
    tc_vis = _squeeze_last(inputs["transmittance_coarse_vis"])
    tf_vis = _squeeze_last(inputs["transmittance_fine_vis"])
    return {
        "rgb_coarse": lambda_mu * jnp.mean((inputs["rgb_coarse"] - tgt_rgb) ** 2),
        "rgb_fine": jnp.mean((inputs["rgb_fine"] - tgt_rgb) ** 2),
        "transmittance_coarse": lambda_mu * visi_loss * jnp.mean(
            (inputs["transmittance_coarse_real"] - tc_vis) ** 2),
        "transmittance_fine": visi_loss * jnp.mean(
            (inputs["transmittance_fine_real"] - tf_vis) ** 2),
    }


# --------------------------------------------------------------------------- #
# Self-test
# --------------------------------------------------------------------------- #
def _make_inputs(key, n_rays, n_samp_c, n_samp_f):
    ks = jax.random.split(key, 7)
    inputs = {
        "rgb_coarse": jax.random.uniform(ks[0], (n_rays, 3), jnp.float32),
        "rgb_fine": jax.random.uniform(ks[1], (n_rays, 3), jnp.float32),
        "transmittance_coarse_real": jax.random.uniform(
            ks[2], (n_rays, n_samp_c), jnp.float32),
        "transmittance_coarse_vis": jax.random.uniform(
            ks[3], (n_rays, n_samp_c, 1), jnp.float32),
        "transmittance_fine_real": jax.random.uniform(
            ks[4], (n_rays, n_samp_f), jnp.float32),
        "transmittance_fine_vis": jax.random.uniform(
            ks[5], (n_rays, n_samp_f, 1), jnp.float32),
    }
    targets = jax.random.uniform(ks[6], (n_rays, 4), jnp.float32)
    return inputs, targets


if __name__ == "__main__":
    keys = jax.random.split(jax.random.PRNGKey(0), 4)
    configs = [
        # (n_rays, S_coarse, S_fine, tile_rows_override, chunks_override)
        (64, 32, 32, None, None),   # L=2048 -> (4,512) single block, fused pairs
        (100, 48, 48, None, None),  # L=4800 -> zero-pad to (10,512), single block
        (272, 64, 64, 8, 2),        # (34,512), 5 blocks: edge mask + padded step
        (128, 48, 64, 8, None),     # coarse/fine differ -> separate pallas calls
    ]
    for cfg_key, (n_rays, sc, sf, tro, co) in zip(keys, configs):
        inputs, targets = _make_inputs(cfg_key, n_rays, sc, sf)
        loss = jax.block_until_ready(
            block_nerf_loss(inputs, targets,
                            tile_rows_override=tro, chunks_override=co))
        ref = jax.block_until_ready(_reference(inputs, targets))
        for k in ("rgb_coarse", "rgb_fine",
                  "transmittance_coarse", "transmittance_fine"):
            assert jnp.allclose(loss[k], ref[k], rtol=1e-4, atol=1e-6), (
                (n_rays, sc, sf, tro, co), k, loss[k], ref[k])

    print("KERNEL_OK")
</pallas_src>

<mosaic_0001>
module attributes {stable_mosaic.version = 11 : i64} {
  func.func @kernel(%arg0: i32, %arg1: i32, %arg2: memref<4x512xf32, #tpu.memory_space<vmem>>, %arg3: memref<4x512xf32, #tpu.memory_space<vmem>>, %arg4: memref<4x512xf32, #tpu.memory_space<vmem>>, %arg5: memref<4x512xf32, #tpu.memory_space<vmem>>, %arg6: memref<1x1x512xf32, #tpu.memory_space<vmem>>, %arg7: memref<1x1x512xf32, #tpu.memory_space<vmem>>, %arg8: memref<4x512xf32, #tpu.memory_space<vmem>>, %arg9: memref<4x512xf32, #tpu.memory_space<vmem>>) attributes {dimension_semantics = [#tpu.dimension_semantics<parallel>, #tpu.dimension_semantics<arbitrary>], iteration_bounds = array<i64: 1, 1>, scalar_prefetch = 0 : i64, scratch_operands = 2 : i64, tpu.core_type = #tpu.core_type<tc>, window_params = [{transform_indices = @transform_0, window_bounds = array<i64: 4, 512>}, {transform_indices = @transform_1, window_bounds = array<i64: 4, 512>}, {transform_indices = @transform_2, window_bounds = array<i64: 4, 512>}, {transform_indices = @transform_3, window_bounds = array<i64: 4, 512>}, {transform_indices = @transform_4, window_bounds = array<i64: 1, 1, 512>}, {transform_indices = @transform_5, window_bounds = array<i64: 1, 1, 512>}]} {
    %c0_i32 = arith.constant 0 : i32
    %0 = arith.cmpi eq, %arg1, %c0_i32 : i32
    %1 = arith.extui %0 : i1 to i32
    %c0_i32_0 = arith.constant 0 : i32
    %2 = arith.cmpi ne, %1, %c0_i32_0 : i32
    scf.if %2 {
      %cst = arith.constant 0.000000e+00 : f32
      %20 = vector.broadcast %cst : f32 to vector<4x512xf32>
      %c0_18 = arith.constant 0 : index
      %c0_19 = arith.constant 0 : index
      %21 = vector.load %arg8[%c0_18, %c0_19] : memref<4x512xf32, #tpu.memory_space<vmem>>, vector<4x512xf32>
      tpu.vector_store %arg8[%c0_18, %c0_19], %20 {strides = array<i32>} : memref<4x512xf32, #tpu.memory_space<vmem>>, vector<4x512xf32>,
      %cst_20 = arith.constant 0.000000e+00 : f32
      %22 = vector.broadcast %cst_20 : f32 to vector<4x512xf32>
      %c0_21 = arith.constant 0 : index
      %c0_22 = arith.constant 0 : index
      %23 = vector.load %arg9[%c0_21, %c0_22] : memref<4x512xf32, #tpu.memory_space<vmem>>, vector<4x512xf32>
      tpu.vector_store %arg9[%c0_21, %c0_22], %22 {strides = array<i32>} : memref<4x512xf32, #tpu.memory_space<vmem>>, vector<4x512xf32>,
    } else {
    }
    %c0 = arith.constant 0 : index
    %c0_1 = arith.constant 0 : index
    %3 = vector.load %arg2[%c0, %c0_1] : memref<4x512xf32, #tpu.memory_space<vmem>>, vector<4x512xf32>
    %c0_2 = arith.constant 0 : index
    %c0_3 = arith.constant 0 : index
    %4 = vector.load %arg3[%c0_2, %c0_3] : memref<4x512xf32, #tpu.memory_space<vmem>>, vector<4x512xf32>
    %5 = arith.subf %3, %4 : vector<4x512xf32>
    %6 = arith.mulf %5, %5 : vector<4x512xf32>
    %c0_4 = arith.constant 0 : index
    %c0_5 = arith.constant 0 : index
    %7 = vector.load %arg8[%c0_4, %c0_5] : memref<4x512xf32, #tpu.memory_space<vmem>>, vector<4x512xf32>
    %8 = arith.addf %7, %6 : vector<4x512xf32>
    %c0_6 = arith.constant 0 : index
    %c0_7 = arith.constant 0 : index
    %9 = vector.load %arg8[%c0_6, %c0_7] : memref<4x512xf32, #tpu.memory_space<vmem>>, vector<4x512xf32>
    tpu.vector_store %arg8[%c0_6, %c0_7], %8 {strides = array<i32>} : memref<4x512xf32, #tpu.memory_space<vmem>>, vector<4x512xf32>,
    %c0_8 = arith.constant 0 : index
    %c0_9 = arith.constant 0 : index
    %10 = vector.load %arg4[%c0_8, %c0_9] : memref<4x512xf32, #tpu.memory_space<vmem>>, vector<4x512xf32>
    %c0_10 = arith.constant 0 : index
    %c0_11 = arith.constant 0 : index
    %11 = vector.load %arg5[%c0_10, %c0_11] : memref<4x512xf32, #tpu.memory_space<vmem>>, vector<4x512xf32>
    %12 = arith.subf %10, %11 : vector<4x512xf32>
    %13 = arith.mulf %12, %12 : vector<4x512xf32>
    %c0_12 = arith.constant 0 : index
    %c0_13 = arith.constant 0 : index
    %14 = vector.load %arg9[%c0_12, %c0_13] : memref<4x512xf32, #tpu.memory_space<vmem>>, vector<4x512xf32>
    %15 = arith.addf %14, %13 : vector<4x512xf32>
    %c0_14 = arith.constant 0 : index
    %c0_15 = arith.constant 0 : index
    %16 = vector.load %arg9[%c0_14, %c0_15] : memref<4x512xf32, #tpu.memory_space<vmem>>, vector<4x512xf32>
    tpu.vector_store %arg9[%c0_14, %c0_15], %15 {strides = array<i32>} : memref<4x512xf32, #tpu.memory_space<vmem>>, vector<4x512xf32>,
    %c0_i32_16 = arith.constant 0 : i32
    %17 = arith.cmpi eq, %arg1, %c0_i32_16 : i32
    %18 = arith.extui %17 : i1 to i32
    %c0_i32_17 = arith.constant 0 : i32
    %19 = arith.cmpi ne, %18, %c0_i32_17 : i32
    scf.if %19 {
      %c0_18 = arith.constant 0 : index
      %c0_19 = arith.constant 0 : index
      %20 = vector.load %arg8[%c0_18, %c0_19] : memref<4x512xf32, #tpu.memory_space<vmem>>, vector<4x512xf32>
      %cst = arith.constant dense<0.000000e+00> : vector<512xf32>
      %21 = vector.multi_reduction <add>, %20, %cst [0] : vector<4x512xf32> to vector<512xf32>
      %22 = vector.shape_cast %21 : vector<512xf32> to vector<1x512xf32>
      %23 = vector.shape_cast %22 : vector<1x512xf32> to vector<1x1x512xf32>
      %c0_20 = arith.constant 0 : index
      %c0_21 = arith.constant 0 : index
      %c0_22 = arith.constant 0 : index
      %24 = vector.load %arg6[%c0_20, %c0_21, %c0_22] : memref<1x1x512xf32, #tpu.memory_space<vmem>>, vector<1x1x512xf32>
      tpu.vector_store %arg6[%c0_20, %c0_21, %c0_22], %23 {strides = array<i32>} : memref<1x1x512xf32, #tpu.memory_space<vmem>>, vector<1x1x512xf32>,
      %c0_23 = arith.constant 0 : index
      %c0_24 = arith.constant 0 : index
      %25 = vector.load %arg9[%c0_23, %c0_24] : memref<4x512xf32, #tpu.memory_space<vmem>>, vector<4x512xf32>
      %cst_25 = arith.constant dense<0.000000e+00> : vector<512xf32>
      %26 = vector.multi_reduction <add>, %25, %cst_25 [0] : vector<4x512xf32> to vector<512xf32>
      %27 = vector.shape_cast %26 : vector<512xf32> to vector<1x512xf32>
      %28 = vector.shape_cast %27 : vector<1x512xf32> to vector<1x1x512xf32>
      %c0_26 = arith.constant 0 : index
      %c0_27 = arith.constant 0 : index
      %c0_28 = arith.constant 0 : index
      %29 = vector.load %arg7[%c0_26, %c0_27, %c0_28] : memref<1x1x512xf32, #tpu.memory_space<vmem>>, vector<1x1x512xf32>
      tpu.vector_store %arg7[%c0_26, %c0_27, %c0_28], %28 {strides = array<i32>} : memref<1x1x512xf32, #tpu.memory_space<vmem>>, vector<1x1x512xf32>,
    } else {
    }
    return
  }
  func.func @transform_0(%arg0: i32, %arg1: i32) -> (i32, i32) {
    %c1_i32 = arith.constant 1 : i32
    %0 = arith.muli %arg0, %c1_i32 : i32
    %1 = arith.addi %0, %arg1 : i32
    %c0_i32 = arith.constant 0 : i32
    %2 = arith.minsi %1, %c0_i32 : i32
    %c0_i32_0 = arith.constant 0 : i32
    %c0_i32_1 = arith.constant 0 : i32
    return %2, %c0_i32_0 : i32, i32
  }
  func.func @transform_1(%arg0: i32, %arg1: i32) -> (i32, i32) {
    %c1_i32 = arith.constant 1 : i32
    %0 = arith.muli %arg0, %c1_i32 : i32
    %1 = arith.addi %0, %arg1 : i32
    %c0_i32 = arith.constant 0 : i32
    %2 = arith.minsi %1, %c0_i32 : i32
    %c0_i32_0 = arith.constant 0 : i32
    %c0_i32_1 = arith.constant 0 : i32
    return %2, %c0_i32_0 : i32, i32
  }
  func.func @transform_2(%arg0: i32, %arg1: i32) -> (i32, i32) {
    %c1_i32 = arith.constant 1 : i32
    %0 = arith.muli %arg0, %c1_i32 : i32
    %1 = arith.addi %0, %arg1 : i32
    %c0_i32 = arith.constant 0 : i32
    %2 = arith.minsi %1, %c0_i32 : i32
    %c0_i32_0 = arith.constant 0 : i32
    %c0_i32_1 = arith.constant 0 : i32
    return %2, %c0_i32_0 : i32, i32
  }
  func.func @transform_3(%arg0: i32, %arg1: i32) -> (i32, i32) {
    %c1_i32 = arith.constant 1 : i32
    %0 = arith.muli %arg0, %c1_i32 : i32
    %1 = arith.addi %0, %arg1 : i32
    %c0_i32 = arith.constant 0 : i32
    %2 = arith.minsi %1, %c0_i32 : i32
    %c0_i32_0 = arith.constant 0 : i32
    %c0_i32_1 = arith.constant 0 : i32
    return %2, %c0_i32_0 : i32, i32
  }
  func.func @transform_4(%arg0: i32, %arg1: i32) -> (i32, i32, i32) {
    %c0_i32 = arith.constant 0 : i32
    %c0_i32_0 = arith.constant 0 : i32
    %c0_i32_1 = arith.constant 0 : i32
    return %arg0, %c0_i32, %c0_i32_0 : i32, i32, i32
  }
  func.func @transform_5(%arg0: i32, %arg1: i32) -> (i32, i32, i32) {
    %c0_i32 = arith.constant 0 : i32
    %c0_i32_0 = arith.constant 0 : i32
    %c0_i32_1 = arith.constant 0 : i32
    return %arg0, %c0_i32, %c0_i32_0 : i32, i32, i32
  }
}

</mosaic_0001>

<llo_original>
// kernel: squeeze.2
$region0: #{squeeze.2}
  %s0 = inlined_call_operand.vmem [shape: f32[64,32,1], index: 0, kind: input, shape index: {}]
  %s1 = inlined_call_operand.vmem [shape: f32[4,512], index: 1, kind: output, shape index: {}]
  $region1: #{squeeze.2} parent=0
    #allocation0 [shape = 'u8[16384]{0}', space=vmem, size = 0x4000, scoped, tag = 'scoped mem for output reshape']
    %v2 = vld [vmem:[%s0] ss:$4 sm:$0xff]
    %vm3 = vcmask 261120
    %4 = vst.msk [vmem:[#allocation0] ss:$8 sm:$0xf] %vm3, %v2
    %s5 = scalar_lea.vmem [#allocation0], 4294967265
    %6 = vst.msk [vmem:[%s5] ss:$8 sm:$0xf0] %vm3, %v2
    %s7 = scalar_lea.vmem %s0, 32
    %v8 = vld [vmem:[%s7] ss:$4 sm:$0xff]
    %vm9 = vcmask 261120
    %s10 = scalar_lea.vmem [#allocation0], 2
    %11 = vst.msk [vmem:[%s10] ss:$8 sm:$0xf] %vm9, %v8
    %s12 = scalar_lea.vmem [#allocation0], 4294967267
    %13 = vst.msk [vmem:[%s12] ss:$8 sm:$0xf0] %vm9, %v8
    %s14 = scalar_lea.vmem %s0, 3
    %s15 = smov 3
    %v16 = vld [vmem:[%s14] ss:$16 sm:%s15]
    %s17 = scalar_lea.vmem %s0, 3
    %s18 = smov 12
    %v19 = vld [vmem:[%s17] ss:$16 sm:%s18]
    %vm20 = vcmask 1043458
    %v21 = vsel %vm20, %v19, %v16
    %s22 = scalar_lea.vmem %s0, 4294967239
    %s23 = smov 48
    %v24 = vld [vmem:[%s22] ss:$16 sm:%s23]
    %vm25 = vcmask 1045508
    %v26 = vsel %vm25, %v24, %v21
    %s27 = scalar_lea.vmem %s0, 4294967239
    %s28 = smov 192
    %v29 = vld [vmem:[%s27] ss:$16 sm:%s28]
    %vm30 = vcmask 1047558
    %v31 = vsel %vm30, %v29, %v26
    %32 = vrot.lane.b32.xlu0 %v31, 96
    %v33 = vpop.permute.xlu0 %32
    %vm34 = vcmask 1048320
    %35 = vst.msk [vmem:[#allocation0] sm:$0xf] %vm34, %v33
    %s36 = scalar_lea.vmem [#allocation0], 4
    %37 = vst.msk [vmem:[%s36] sm:$0xf0] %vm34, %v33
    %s38 = scalar_lea.vmem %s0, 11
    %s39 = smov 3
    %v40 = vld [vmem:[%s38] ss:$16 sm:%s39]
    %s41 = scalar_lea.vmem %s0, 11
    %s42 = smov 12
    %v43 = vld [vmem:[%s41] ss:$16 sm:%s42]
    %vm44 = vcmask 1043458
    %v45 = vsel %vm44, %v43, %v40
    %s46 = scalar_lea.vmem %s0, 4294967247
    %s47 = smov 48
    %v48 = vld [vmem:[%s46] ss:$16 sm:%s47]
    %vm49 = vcmask 1045508
    %v50 = vsel %vm49, %v48, %v45
    %s51 = scalar_lea.vmem %s0, 4294967247
    %s52 = smov 192
    %v53 = vld [vmem:[%s51] ss:$16 sm:%s52]
    %vm54 = vcmask 1047558
    %v55 = vsel %vm54, %v53, %v50
    %56 = vrot.lane.b32.xlu0 %v55, 96
    %v57 = vpop.permute.xlu0 %56
    %vm58 = vcmask 1048320
    %s59 = scalar_lea.vmem [#allocation0], 16
    %60 = vst.msk [vmem:[%s59] sm:$0xf] %vm58, %v57
    %s61 = scalar_lea.vmem [#allocation0], 20
    %62 = vst.msk [vmem:[%s61] sm:$0xf0] %vm58, %v57
    %s63 = scalar_lea.vmem %s0, 2
    %s64 = smov 3
    %v65 = vld [vmem:[%s63] ss:$16 sm:%s64]
    %s66 = scalar_lea.vmem %s0, 2
    %s67 = smov 12
    %v68 = vld [vmem:[%s66] ss:$16 sm:%s67]
    %vm69 = vcmask 1043458
    %v70 = vsel %vm69, %v68, %v65
    %s71 = scalar_lea.vmem %s0, 4294967238
    %s72 = smov 48
    %v73 = vld [vmem:[%s71] ss:$16 sm:%s72]
    %vm74 = vcmask 1045508
    %v75 = vsel %vm74, %v73, %v70
    %s76 = scalar_lea.vmem %s0, 4294967238
    %s77 = smov 192
    %v78 = vld [vmem:[%s76] ss:$16 sm:%s77]
    %vm79 = vcmask 1047558
    %v80 = vsel %vm79, %v78, %v75
    %81 = vrot.lane.b32.xlu0 %v80, 64
    %v82 = vpop.permute.xlu0 %81
    %vm83 = vcmask 785920
    %84 = vst.msk [vmem:[#allocation0] sm:$0xf] %vm83, %v82
    %s85 = scalar_lea.vmem [#allocation0], 4
    %86 = vst.msk [vmem:[%s85] sm:$0xf0] %vm83, %v82
    %s87 = scalar_lea.vmem %s0, 10
    %s88 = smov 3
    %v89 = vld [vmem:[%s87] ss:$16 sm:%s88]
    %s90 = scalar_lea.vmem %s0, 10
    %s91 = smov 12
    %v92 = vld [vmem:[%s90] ss:$16 sm:%s91]
    %vm93 = vcmask 1043458
    %v94 = vsel %vm93, %v92, %v89
    %s95 = scalar_lea.vmem %s0, 4294967246
    %s96 = smov 48
    %v97 = vld [vmem:[%s95] ss:$16 sm:%s96]
    %vm98 = vcmask 1045508
    %v99 = vsel %vm98, %v97, %v94
    %s100 = scalar_lea.vmem %s0, 4294967246
    %s101 = smov 192
    %v102 = vld [vmem:[%s100] ss:$16 sm:%s101]
    %vm103 = vcmask 1047558
    %v104 = vsel %vm103, %v102, %v99
    %105 = vrot.lane.b32.xlu0 %v104, 64
    %v106 = vpop.permute.xlu0 %105
    %vm107 = vcmask 785920
    %s108 = scalar_lea.vmem [#allocation0], 16
    %109 = vst.msk [vmem:[%s108] sm:$0xf] %vm107, %v106
    %s110 = scalar_lea.vmem [#allocation0], 20
    %111 = vst.msk [vmem:[%s110] sm:$0xf0] %vm107, %v106
    %s112 = scalar_lea.vmem %s0, 1
    %s113 = smov 3
    %v114 = vld [vmem:[%s112] ss:$16 sm:%s113]
    %s115 = scalar_lea.vmem %s0, 1
    %s116 = smov 12
    %v117 = vld [vmem:[%s115] ss:$16 sm:%s116]
    %vm118 = vcmask 1043458
    %v119 = vsel %vm118, %v117, %v114
    %s120 = scalar_lea.vmem %s0, 4294967237
    %s121 = smov 48
    %v122 = vld [vmem:[%s120] ss:$16 sm:%s121]
    %vm123 = vcmask 1045508
    %v124 = vsel %vm123, %v122, %v119
    %s125 = scalar_lea.vmem %s0, 4294967237
    %s126 = smov 192
    %v127 = vld [vmem:[%s125] ss:$16 sm:%s126]
    %vm128 = vcmask 1047558
    %v129 = vsel %vm128, %v127, %v124
    %130 = vrot.lane.b32.xlu0 %v129, 32
    %v131 = vpop.permute.xlu0 %130
    %vm132 = vcmask 523520
    %133 = vst.msk [vmem:[#allocation0] sm:$0xf] %vm132, %v131
    %s134 = scalar_lea.vmem [#allocation0], 4
    %135 = vst.msk [vmem:[%s134] sm:$0xf0] %vm132, %v131
    %s136 = scalar_lea.vmem %s0, 9
    %s137 = smov 3
    %v138 = vld [vmem:[%s136] ss:$16 sm:%s137]
    %s139 = scalar_lea.vmem %s0, 9
    %s140 = smov 12
    %v141 = vld [vmem:[%s139] ss:$16 sm:%s140]
    %vm142 = vcmask 1043458
    %v143 = vsel %vm142, %v141, %v138
    %s144 = scalar_lea.vmem %s0, 4294967245
    %s145 = smov 48
    %v146 = vld [vmem:[%s144] ss:$16 sm:%s145]
    %vm147 = vcmask 1045508
    %v148 = vsel %vm147, %v146, %v143
    %s149 = scalar_lea.vmem %s0, 4294967245
    %s150 = smov 192
    %v151 = vld [vmem:[%s149] ss:$16 sm:%s150]
    %vm152 = vcmask 1047558
    %v153 = vsel %vm152, %v151, %v148
    %154 = vrot.lane.b32.xlu0 %v153, 32
    %v155 = vpop.permute.xlu0 %154
    %vm156 = vcmask 523520
    %s157 = scalar_lea.vmem [#allocation0], 16
    %158 = vst.msk [vmem:[%s157] sm:$0xf] %vm156, %v155
    %s159 = scalar_lea.vmem [#allocation0], 20
    %160 = vst.msk [vmem:[%s159] sm:$0xf0] %vm156, %v155
    %s162 = sshllo.u32 0, 4
    %v164 = vld [vmem:[#allocation0] sm:%s162]
    %s165 = sshllo.u32 0, 4
    %166 = vst [vmem:[%s1] sm:%s165] %v164
    %s167 = scalar_lea.vmem [#allocation0], 8
    %v168 = vld [vmem:[%s167] sm:%s162]
    %s169 = sshllo.u32 0, 4
    %s170 = scalar_lea.vmem %s1, 4
    %171 = vst [vmem:[%s170] sm:%s169] %v168
    %s172 = scalar_lea.vmem [#allocation0], 16
    %v173 = vld [vmem:[%s172] sm:%s162]
    %s174 = sshllo.u32 0, 4
    %s175 = smul.addr 4, 2
    %s176 = scalar_lea.vmem %s1, %s175
    %177 = vst [vmem:[%s176] sm:%s174] %v173
    %s178 = scalar_lea.vmem [#allocation0], 24
    %v179 = vld [vmem:[%s178] sm:%s162]
    %s180 = sshllo.u32 0, 4
    %s181 = smul.addr 4, 3
    %s182 = scalar_lea.vmem %s1, %s181
    %183 = vst [vmem:[%s182] sm:%s180] %v179

// kernel: block_nerf_loss.1
$region0: #{block_nerf_loss.1}
  #allocation0 [shape = 'u32[]', space=smem, size = 0x4, offset = 0x4, fixed_abs, tag = 'smem constant byte address 0x4 - core index']
  #allocation1 [shape = 'u32[144,128]{1,0:T(1,128)}', space=vmem, size = 0x12000, scoped, tag = 'internal scratch']
  #allocation2 [shape = 'f32[4,512]{1,0:T(4,128)}', space=vmem, size = 0x2000, scoped, tag = 'scratch operand']
  #allocation3 [shape = 'f32[4,512]{1,0:T(4,128)}', space=vmem, size = 0x2000, scoped, tag = 'scratch operand']
  %s0 = inlined_call_operand.vmem [shape: f32[4,512], index: 0, kind: input, shape index: {}]
  %s1 = inlined_call_operand.vmem [shape: f32[4,512], index: 1, kind: input, shape index: {}]
  %s2 = inlined_call_operand.vmem [shape: f32[4,512], index: 2, kind: input, shape index: {}]
  %s3 = inlined_call_operand.vmem [shape: f32[4,512], index: 3, kind: input, shape index: {}]
  %s4 = inlined_call_operand.vmem [shape: f32[1,1,512], index: 4, kind: output, shape index: {0}]
  %s5 = inlined_call_operand.vmem [shape: f32[1,1,512], index: 5, kind: output, shape index: {1}]
  %6 = xla_tuple %s4, %s5
  %s7 = sld [smem:[#allocation0]]
  $region42: #{block_nerf_loss.1} parent=0
    _
  %s9 = ssub.s32 1, %s7
  %s10 = scalar_select 0, %s9, %s7
  // Predicated region
  $region2: #{block_nerf_loss.1} parent=0 // pred_check
    _
  $region3: #{block_nerf_loss.1} parent=0 // pred_check_branch
    %12 = sbr.rel (0) target = $region5
  $region4: #{block_nerf_loss.1} parent=0 // pred_region
    %s13 = sadd.s32 0, 0
    %p14 = scmp.lt.s32.totalorder %s13, 0
    %s15 = scalar_select %p14, %s13, 0
    %p16 = scmp.lt.s32.totalorder %s15, 0
    %s17 = scalar_select %p16, %s15, 0
    %s18 = smul.addr %s17, 4
    %s19 = smul.addr %s18, 4
    %s20 = scalar_lea.vmem %s0, %s19
    %s21 = sadd.s32 0, 0
    %p22 = scmp.lt.s32.totalorder %s21, 0
    %s23 = scalar_select %p22, %s21, 0
  $region5: #{block_nerf_loss.1} parent=0 // pred_fallthru
    _
  // Predicated region
  $region6: #{block_nerf_loss.1} parent=0 // pred_check
    _
  $region7: #{block_nerf_loss.1} parent=0 // pred_check_branch
    %25 = sbr.rel (0) target = $region9
  $region8: #{block_nerf_loss.1} parent=0 // pred_region
    %s26 = sadd.s32 0, 0
    %p27 = scmp.lt.s32.totalorder %s26, 0
    %s28 = scalar_select %p27, %s26, 0
    %p29 = scmp.lt.s32.totalorder %s28, 0
    %s30 = scalar_select %p29, %s28, 0
    %s31 = smul.addr %s30, 4
    %s32 = smul.addr %s31, 4
    %s33 = scalar_lea.vmem %s1, %s32
    %s34 = sadd.s32 0, 0
    %p35 = scmp.lt.s32.totalorder %s34, 0
    %s36 = scalar_select %p35, %s34, 0
  $region9: #{block_nerf_loss.1} parent=0 // pred_fallthru
    _
  // Predicated region
  $region10: #{block_nerf_loss.1} parent=0 // pred_check
    _
  $region11: #{block_nerf_loss.1} parent=0 // pred_check_branch
    %38 = sbr.rel (0) target = $region13
  $region12: #{block_nerf_loss.1} parent=0 // pred_region
    %s39 = sadd.s32 0, 0
    %p40 = scmp.lt.s32.totalorder %s39, 0
    %s41 = scalar_select %p40, %s39, 0
    %p42 = scmp.lt.s32.totalorder %s41, 0
    %s43 = scalar_select %p42, %s41, 0
    %s44 = smul.addr %s43, 4
    %s45 = smul.addr %s44, 4
    %s46 = scalar_lea.vmem %s2, %s45
    %s47 = sadd.s32 0, 0
    %p48 = scmp.lt.s32.totalorder %s47, 0
    %s49 = scalar_select %p48, %s47, 0
  $region13: #{block_nerf_loss.1} parent=0 // pred_fallthru
    _
  // Predicated region
  $region14: #{block_nerf_loss.1} parent=0 // pred_check
    _
  $region15: #{block_nerf_loss.1} parent=0 // pred_check_branch
    %51 = sbr.rel (0) target = $region17
  $region16: #{block_nerf_loss.1} parent=0 // pred_region
    %s52 = sadd.s32 0, 0
    %p53 = scmp.lt.s32.totalorder %s52, 0
    %s54 = scalar_select %p53, %s52, 0
    %p55 = scmp.lt.s32.totalorder %s54, 0
    %s56 = scalar_select %p55, %s54, 0
    %s57 = smul.addr %s56, 4
    %s58 = smul.addr %s57, 4
    %s59 = scalar_lea.vmem %s3, %s58
    %s60 = sadd.s32 0, 0
    %p61 = scmp.lt.s32.totalorder %s60, 0
    %s62 = scalar_select %p61, %s60, 0
  $region17: #{block_nerf_loss.1} parent=0 // pred_fallthru
    _
  %s63 = sadd.s32 0, 0
  %p64 = scmp.lt.s32.totalorder %s63, 0
  %s65 = scalar_select %p64, %s63, 0
  %p66 = scmp.lt.s32.totalorder %s65, 0
  %s67 = scalar_select %p66, %s65, 0
  %s68 = smul.addr %s67, 4
  %s69 = smul.addr %s68, 4
  %s70 = scalar_lea.vmem %s0, %s69
  %s71 = sadd.s32 0, 0
  %p72 = scmp.lt.s32.totalorder %s71, 0
  %s73 = scalar_select %p72, %s71, 0
  %p74 = scmp.lt.s32.totalorder %s73, 0
  %s75 = scalar_select %p74, %s73, 0
  %s76 = smul.addr %s75, 4
  %s77 = smul.addr %s76, 4
  %s78 = scalar_lea.vmem %s1, %s77
  %s79 = sadd.s32 0, 0
  %p80 = scmp.lt.s32.totalorder %s79, 0
  %s81 = scalar_select %p80, %s79, 0
  %p82 = scmp.lt.s32.totalorder %s81, 0
  %s83 = scalar_select %p82, %s81, 0
  %s84 = smul.addr %s83, 4
  %s85 = smul.addr %s84, 4
  %s86 = scalar_lea.vmem %s2, %s85
  %s87 = sadd.s32 0, 0
  %p88 = scmp.lt.s32.totalorder %s87, 0
  %s89 = scalar_select %p88, %s87, 0
  %p90 = scmp.lt.s32.totalorder %s89, 0
  %s91 = scalar_select %p90, %s89, 0
  %s92 = smul.addr %s91, 4
  %s93 = smul.addr %s92, 4
  %s94 = scalar_lea.vmem %s3, %s93
  %s95 = sadd.s32 0, 0
  %p96 = scmp.lt.s32.totalorder %s95, 0
  %s97 = scalar_select %p96, %s95, 0
  %p98 = scmp.lt.s32.totalorder %s97, 0
  %s99 = scalar_select %p98, %s97, 0
  %s100 = smul.addr %s99, 4
  %s101 = smul.addr %s100, 4
  %s102 = scalar_lea.vmem %s0, %s101
  %s103 = sadd.s32 0, 0
  %p104 = scmp.lt.s32.totalorder %s103, 0
  %s105 = scalar_select %p104, %s103, 0
  %s106 = sadd.s32 0, 0
  %p107 = scmp.lt.s32.totalorder %s106, 0
  %s108 = scalar_select %p107, %s106, 0
  %p109 = scmp.lt.s32.totalorder %s108, 0
  %s110 = scalar_select %p109, %s108, 0
  %s111 = smul.addr %s110, 4
  %s112 = smul.addr %s111, 4
  %s113 = scalar_lea.vmem %s1, %s112
  %s114 = sadd.s32 0, 0
  %p115 = scmp.lt.s32.totalorder %s114, 0
  %s116 = scalar_select %p115, %s114, 0
  %s117 = sadd.s32 0, 0
  %p118 = scmp.lt.s32.totalorder %s117, 0
  %s119 = scalar_select %p118, %s117, 0
  %p120 = scmp.lt.s32.totalorder %s119, 0
  %s121 = scalar_select %p120, %s119, 0
  %s122 = smul.addr %s121, 4
  %s123 = smul.addr %s122, 4
  %s124 = scalar_lea.vmem %s2, %s123
  %s125 = sadd.s32 0, 0
  %p126 = scmp.lt.s32.totalorder %s125, 0
  %s127 = scalar_select %p126, %s125, 0
  %s128 = sadd.s32 0, 0
  %p129 = scmp.lt.s32.totalorder %s128, 0
  %s130 = scalar_select %p129, %s128, 0
  %p131 = scmp.lt.s32.totalorder %s130, 0
  %s132 = scalar_select %p131, %s130, 0
  %s133 = smul.addr %s132, 4
  %s134 = smul.addr %s133, 4
  %s135 = scalar_lea.vmem %s3, %s134
  %s136 = sadd.s32 0, 0
  %p137 = scmp.lt.s32.totalorder %s136, 0
  %s138 = scalar_select %p137, %s136, 0
  %p139 = scmp.eq.s32.totalorder 0, 0
  // Predicated region
  $region18: #{block_nerf_loss.1} parent=0 // pred_check
    %p140 = pneg %p139
  $region19: #{block_nerf_loss.1} parent=0 // pred_check_branch
    %142 = sbr.rel (%p140) target = $region21
  $region20: #{block_nerf_loss.1} parent=0 // pred_region
    %143 = vst [vmem:[#allocation2] sm:$0xff] 0.0
    %144 = vst [vmem:[#allocation2 + $0x8] sm:$0xff] 0.0
    %145 = vst [vmem:[#allocation3] sm:$0xff] 0.0
    %146 = vst [vmem:[#allocation3 + $0x8] sm:$0xff] 0.0
  $region21: #{block_nerf_loss.1} parent=0 // pred_fallthru
    _
  %v147 = vld [vmem:[%s102] sm:$0xff]
  %v148 = vld [vmem:[%s102 + $0x8] sm:$0xff]
  %v149 = vld [vmem:[%s113] sm:$0xff]
  %v150 = vld [vmem:[%s113 + $0x8] sm:$0xff]
  %v151 = vsub.f32 %v147, %v149
  %v152 = vsub.f32 %v148, %v150
  %v153 = vmul.f32 %v151, %v151
  %v154 = vmul.f32 %v152, %v152
  %v155 = vld [vmem:[#allocation2] sm:$0xff]
  %v156 = vld [vmem:[#allocation2 + $0x8] sm:$0xff]
  %v157 = vadd.f32 %v155, %v153
  %v158 = vadd.f32 %v156, %v154
  %159 = vst [vmem:[#allocation2] sm:$0xff] %v157
  %160 = vst [vmem:[#allocation2 + $0x8] sm:$0xff] %v158
  %v161 = vld [vmem:[%s124] sm:$0xff]
  %v162 = vld [vmem:[%s124 + $0x8] sm:$0xff]
  %v163 = vld [vmem:[%s135] sm:$0xff]
  %v164 = vld [vmem:[%s135 + $0x8] sm:$0xff]
  %v165 = vsub.f32 %v161, %v163
  %v166 = vsub.f32 %v162, %v164
  %v167 = vmul.f32 %v165, %v165
  %v168 = vmul.f32 %v166, %v166
  %v169 = vld [vmem:[#allocation3] sm:$0xff]
  %v170 = vld [vmem:[#allocation3 + $0x8] sm:$0xff]
  %v171 = vadd.f32 %v169, %v167
  %v172 = vadd.f32 %v170, %v168
  %173 = vst [vmem:[#allocation3] sm:$0xff] %v171
  %174 = vst [vmem:[#allocation3 + $0x8] sm:$0xff] %v172
  // Predicated region
  $region22: #{block_nerf_loss.1} parent=0 // pred_check
    %p175 = pneg %p139
  $region23: #{block_nerf_loss.1} parent=0 // pred_check_branch
    %177 = sbr.rel (%p175) target = $region25
  $region24: #{block_nerf_loss.1} parent=0 // pred_region
    %v178 = vld [vmem:[#allocation2] sm:$0xff]
    %v179 = vld [vmem:[#allocation2 + $0x8] sm:$0xff]
    %v182 = vcombine.high %v178, %v178
    %v183 = vcombine.high %v179, %v179
    %vm186 = vcmask 1043456
    %v187 = vsel %vm186, %v178, 0.0
    %v188 = vrot.slane %v187, 4
    %v189 = vadd.f32 %v187, %v188
    %v190 = vrot.slane %v189, 2
    %v191 = vadd.f32 %v189, %v190
    %v192 = vrot.slane %v191, 1
    %v193 = vadd.f32 %v191, %v192
    %v194 = vsel %vm186, %v182, 0.0
    %v195 = vrot.slane %v194, 4
    %v196 = vadd.f32 %v194, %v195
    %v197 = vrot.slane %v196, 2
    %v198 = vadd.f32 %v196, %v197
    %v199 = vrot.slane %v198, 1
    %v200 = vadd.f32 %v198, %v199
    %v201 = vsel %vm186, %v179, 0.0
    %v202 = vrot.slane %v201, 4
    %v203 = vadd.f32 %v201, %v202
    %v204 = vrot.slane %v203, 2
    %v205 = vadd.f32 %v203, %v204
    %v206 = vrot.slane %v205, 1
    %v207 = vadd.f32 %v205, %v206
    %v208 = vsel %vm186, %v183, 0.0
    %v209 = vrot.slane %v208, 4
    %v210 = vadd.f32 %v208, %v209
    %v211 = vrot.slane %v210, 2
    %v212 = vadd.f32 %v210, %v211
    %v213 = vrot.slane %v212, 1
    %v214 = vadd.f32 %v212, %v213
    %v219 = vcombine.low %v193, %v200
    %v220 = vcombine.low %v207, %v214
    %v222 = vunpack.c.l.s4 1966171168
    %v223 = vunpack.c.0.s8 %v222
    %v224 = vlaneseq
    %v225 = vshrl.u32 %v224, 7
    %v226 = vsub.s32 %v223, %v225
    %v227 = vrot.slane %v219, %v226
    %v229 = vunpack.c.l.s4 1966171168
    %v230 = vunpack.c.0.s8 %v229
    %v231 = vlaneseq
    %v232 = vshrl.u32 %v231, 7
    %v233 = vsub.s32 %v230, %v232
    %v234 = vrot.slane %v220, %v233
    %v235 = vcombine.low %v227, %v234
    %v237 = vunpack.c.l.s4 1966171168
    %v238 = vunpack.c.0.s8 %v237
    %v239 = vlaneseq
    %v240 = vshrl.u32 %v239, 7
    %v241 = vsub.s32 %v238, %v240
    %v242 = vrot.slane %v235, %v241
    %v244 = vlaneseq
    %vm245 = vcmp.ge.s32.totalorder %v244, 0
    %vm246 = vcmp.lt.s32.totalorder %v244, 512
    %vm247 = vmand %vm245, %vm246
    %248 = vst.msk [vmem:[%s4] sm:$0xf] %vm247, %v242
    %v249 = vld [vmem:[#allocation3] sm:$0xff]
    %v250 = vld [vmem:[#allocation3 + $0x8] sm:$0xff]
    %v253 = vcombine.high %v249, %v249
    %v254 = vcombine.high %v250, %v250
    %v257 = vsel %vm186, %v249, 0.0
    %v258 = vrot.slane %v257, 4
    %v259 = vadd.f32 %v257, %v258
    %v260 = vrot.slane %v259, 2
    %v261 = vadd.f32 %v259, %v260
    %v262 = vrot.slane %v261, 1
    %v263 = vadd.f32 %v261, %v262
    %v264 = vsel %vm186, %v253, 0.0
    %v265 = vrot.slane %v264, 4
    %v266 = vadd.f32 %v264, %v265
    %v267 = vrot.slane %v266, 2
    %v268 = vadd.f32 %v266, %v267
    %v269 = vrot.slane %v268, 1
    %v270 = vadd.f32 %v268, %v269
    %v271 = vsel %vm186, %v250, 0.0
    %v272 = vrot.slane %v271, 4
    %v273 = vadd.f32 %v271, %v272
    %v274 = vrot.slane %v273, 2
    %v275 = vadd.f32 %v273, %v274
    %v276 = vrot.slane %v275, 1
    %v277 = vadd.f32 %v275, %v276
    %v278 = vsel %vm186, %v254, 0.0
    %v279 = vrot.slane %v278, 4
    %v280 = vadd.f32 %v278, %v279
    %v281 = vrot.slane %v280, 2
    %v282 = vadd.f32 %v280, %v281
    %v283 = vrot.slane %v282, 1
    %v284 = vadd.f32 %v282, %v283
    %v289 = vcombine.low %v263, %v270
    %v290 = vcombine.low %v277, %v284
    %v292 = vunpack.c.l.s4 1966171168
    %v293 = vunpack.c.0.s8 %v292
    %v294 = vlaneseq
    %v295 = vshrl.u32 %v294, 7
    %v296 = vsub.s32 %v293, %v295
    %v297 = vrot.slane %v289, %v296
    %v299 = vunpack.c.l.s4 1966171168
    %v300 = vunpack.c.0.s8 %v299
    %v301 = vlaneseq
    %v302 = vshrl.u32 %v301, 7
    %v303 = vsub.s32 %v300, %v302
    %v304 = vrot.slane %v290, %v303
    %v305 = vcombine.low %v297, %v304
    %v307 = vunpack.c.l.s4 1966171168
    %v308 = vunpack.c.0.s8 %v307
    %v309 = vlaneseq
    %v310 = vshrl.u32 %v309, 7
    %v311 = vsub.s32 %v308, %v310
    %v312 = vrot.slane %v305, %v311
    %314 = vst.msk [vmem:[%s5] sm:$0xf] %vm247, %v312
  $region25: #{block_nerf_loss.1} parent=0 // pred_fallthru
    _
  // Predicated region
  $region26: #{block_nerf_loss.1} parent=0 // pred_check
    _
  $region27: #{block_nerf_loss.1} parent=0 // pred_check_branch
    %316 = sbr.rel (0) target = $region29
  $region28: #{block_nerf_loss.1} parent=0 // pred_region
    _
  $region29: #{block_nerf_loss.1} parent=0 // pred_fallthru
    _
  // Predicated region
  $region30: #{block_nerf_loss.1} parent=0 // pred_check
    _
  $region31: #{block_nerf_loss.1} parent=0 // pred_check_branch
    %318 = sbr.rel (0) target = $region33
  $region32: #{block_nerf_loss.1} parent=0 // pred_region
    _
  $region33: #{block_nerf_loss.1} parent=0 // pred_fallthru
    _
  // Predicated region
  $region34: #{block_nerf_loss.1} parent=0 // pred_check
    _
  $region35: #{block_nerf_loss.1} parent=0 // pred_check_branch
    %320 = sbr.rel (0) target = $region37
  $region36: #{block_nerf_loss.1} parent=0 // pred_region
    _
  $region37: #{block_nerf_loss.1} parent=0 // pred_fallthru
    _
  // Predicated region
  $region38: #{block_nerf_loss.1} parent=0 // pred_check
    _
  $region39: #{block_nerf_loss.1} parent=0 // pred_check_branch
    %322 = sbr.rel (0) target = $region41
  $region40: #{block_nerf_loss.1} parent=0 // pred_region
    _
  $region41: #{block_nerf_loss.1} parent=0 // pred_fallthru
    _

</llo_original>
